<compile_context>
chip_gen: v5e
topology: v5e:2x2
jax: 0.10.0
libtpu: 0.0.40
codegen_flags: <defaults>
</compile_context>

<pallas_src>
import jax
import jax.numpy as jnp
from jax.experimental import pallas as pl
from jax.experimental.pallas import tpu as pltpu


def _copy_kernel(x_ref, o_ref):
    # Input block is already windowed to exactly the kept region -> pure copy.
    o_ref[...] = x_ref[...]


def _slice_kernel(x_ref, o_ref):
    # Input block is windowed to round_up(l_out, 128) (or full L) columns;
    # keep only the first l_out columns.
    o_ref[...] = x_ref[:, : o_ref.shape[-1]]


def chomp1d(x: jax.Array, chomp_size: int, *,
            target_block_bytes: int = 2 * 1024 * 1024) -> jax.Array:
    """Pallas equivalent of Chomp1d(chomp_size)(x) for x of shape (N, C, L)."""
    assert chomp_size > 0, "chomp_size must be positive (matches x[:, :, :-k])"
    n, c, l = x.shape
    l_out = l - chomp_size
    assert l_out > 0, "chomp_size must be smaller than the sequence length"

    r = n * c
    x2 = x.reshape(r, l)  # contiguous reshape: free

    itemsize = jnp.dtype(x.dtype).itemsize
    # Sublane pack: 8 rows for 4-byte, 16 for 2-byte, 32 for 1-byte dtypes.
    sublane = max(8, 32 // max(1, itemsize))

    # Input DMA window along the lane axis: the kept length rounded up to the
    # lane width (128) so the BlockSpec satisfies the (8, 128) constraint while
    # never reading (much of) the chomped tail.  If rounding up reaches or
    # exceeds L, fall back to the full input width (== full array dim, always
    # a legal block extent).
    l_out_pad = ((l_out + 127) // 128) * 128
    in_width = l_out_pad if l_out_pad < l else l

    # Rows per block sized so one input block is ~target_block_bytes (input +
    # output, double-buffered, stays well under every generation's scoped VMEM
    # budget), rounded to the sublane pack.
    rows = max(1, target_block_bytes // (in_width * itemsize))
    rows = max(sublane, (rows // sublane) * sublane)
    tile_r = min(r, rows)  # multiple of `sublane`, or the full row count R

    grid = (pl.cdiv(r, tile_r),)

    if in_width == l_out:
        # 128-lane-aligned kept region: the DMA window is exactly the kept
        # region and the kernel body is a pure copy.
        kernel = _copy_kernel
    else:
        # Unaligned l_out: DMA window is <=127 columns wider than needed;
        # slice the first l_out columns in VMEM.
        kernel = _slice_kernel

    in_spec = pl.BlockSpec((tile_r, in_width), lambda i: (i, 0))
    # Output block's lane extent equals the full output width -> always legal,
    # regardless of 128 alignment.
    out_spec = pl.BlockSpec((tile_r, l_out), lambda i: (i, 0))

    in_bytes = r * in_width * itemsize
    out_bytes = r * l_out * itemsize

    out2 = pl.pallas_call(
        kernel,
        out_shape=jax.ShapeDtypeStruct((r, l_out), x.dtype),
        grid=grid,
        in_specs=[in_spec],
        out_specs=out_spec,
        compiler_params=pltpu.CompilerParams(
            dimension_semantics=("parallel",),
            vmem_limit_bytes=32 * 1024 * 1024,
        ),
        cost_estimate=pl.CostEstimate(
            flops=0,
            transcendentals=0,
            bytes_accessed=in_bytes + out_bytes,
        ),
    )(x2)

    return out2.reshape(n, c, l_out)


if __name__ == "__main__":
    key = jax.random.PRNGKey(0)
    k1, k2, k3 = jax.random.split(key, 3)

    # Case 1: small, unaligned kept length (l_out = 13) -> slice path with
    # full-width input window (round-up exceeds L).
    N, C, L, chomp = 2, 4, 16, 3
    x = jax.random.normal(k1, (N, C, L), dtype=jnp.float32)
    out = jax.block_until_ready(chomp1d(x, chomp))
    ref = x[:, :, :-chomp]
    assert out.shape == (N, C, L - chomp), out.shape
    assert out.dtype == x.dtype
    assert jnp.array_equal(out, ref), "Pallas Chomp1d mismatch (small slice path)"

    # Case 2: 128-lane-aligned kept length (l_out = 128) -> pure-copy path,
    # chomped tail never read from HBM.
    N2, C2, L2, chomp2 = 2, 4, 131, 3
    y = jax.random.normal(k2, (N2, C2, L2), dtype=jnp.float32)
    out2 = jax.block_until_ready(chomp1d(y, chomp2))
    ref2 = y[:, :, :-chomp2]
    assert out2.shape == (N2, C2, L2 - chomp2), out2.shape
    assert jnp.array_equal(out2, ref2), "Pallas Chomp1d mismatch (aligned copy path)"

    # Case 3: large chomp (high-dilation TCN layer), unaligned kept length ->
    # windowed input DMA (256 cols read instead of 400), slice in VMEM.
    N3, C3, L3, chomp3 = 2, 4, 400, 200
    z = jax.random.normal(k3, (N3, C3, L3), dtype=jnp.bfloat16)
    out3 = jax.block_until_ready(chomp1d(z, chomp3))
    ref3 = z[:, :, :-chomp3]
    assert out3.shape == (N3, C3, L3 - chomp3), out3.shape
    assert out3.dtype == z.dtype
    assert jnp.array_equal(out3, ref3), "Pallas Chomp1d mismatch (windowed slice path)"

    print("KERNEL_OK")
</pallas_src>

<mosaic_0001>
module attributes {stable_mosaic.version = 11 : i64} {
  func.func @_slice_kernel(%arg0: i32, %arg1: memref<8x16xf32, #tpu.memory_space<vmem>>, %arg2: memref<8x13xf32, #tpu.memory_space<vmem>>) attributes {dimension_semantics = [#tpu.dimension_semantics<parallel>], iteration_bounds = array<i64: 1>, scalar_prefetch = 0 : i64, scratch_operands = 0 : i64, tpu.core_type = #tpu.core_type<tc>, window_params = [{transform_indices = @transform_0, window_bounds = array<i64: 8, 16>}, {transform_indices = @transform_1, window_bounds = array<i64: 8, 13>}]} {
    %c0 = arith.constant 0 : index
    %c0_0 = arith.constant 0 : index
    %0 = vector.load %arg1[%c0, %c0_0] : memref<8x16xf32, #tpu.memory_space<vmem>>, vector<8x13xf32>
    %c0_1 = arith.constant 0 : index
    %c0_2 = arith.constant 0 : index
    %1 = vector.load %arg2[%c0_1, %c0_2] : memref<8x13xf32, #tpu.memory_space<vmem>>, vector<8x13xf32>
    tpu.vector_store %arg2[%c0_1, %c0_2], %0 {strides = array<i32>} : memref<8x13xf32, #tpu.memory_space<vmem>>, vector<8x13xf32>,
    return
  }
  func.func @transform_0(%arg0: i32) -> (i32, i32) {
    %c0_i32 = arith.constant 0 : i32
    %c0_i32_0 = arith.constant 0 : i32
    return %arg0, %c0_i32 : i32, i32
  }
  func.func @transform_1(%arg0: i32) -> (i32, i32) {
    %c0_i32 = arith.constant 0 : i32
    %c0_i32_0 = arith.constant 0 : i32
    return %arg0, %c0_i32 : i32, i32
  }
}

</mosaic_0001>

<llo_original>
// kernel: tpu_custom_call.1
$region0: #{tpu_custom_call.1}
  #allocation0 [shape = 'u32[]', space=smem, size = 0x4, offset = 0x4, fixed_abs, tag = 'smem constant byte address 0x4 - core index']
  #allocation1 [shape = 'u32[72,128]{1,0:T(1,128)}', space=vmem, size = 0x9000, scoped, tag = 'internal scratch']
  %s0 = inlined_call_operand.hbm [shape: f32[8,16], index: 0, kind: input, shape index: {}]
  %s1 = inlined_call_operand.hbm [shape: f32[8,13], index: 1, kind: output, shape index: {}]
  %s2 = sld [smem:[#allocation0]]
  $region18: #{tpu_custom_call.1} parent=0
    _
  %s4 = ssub.s32 1, %s2
  %s5 = scalar_select 0, %s4, %s2
  $region1: #{tpu_custom_call.1} parent=0
    #allocation2 [shape = 'u8[4096]{0}', space=vmem, size = 0x1000, scoped, tag = 'input window, operand 0, single buffered']
    #allocation3 [shape = 's32[1]{0}', space=sflag, size = 0x4, scoped, tag = 'scoped memory for tpu_custom_call.1']
    #allocation4 [shape = 's32[1]{0}', space=sflag, size = 0x4, scoped, tag = 'scoped memory for tpu_custom_call.1']
    #allocation5 [shape = 'u8[4096]{0}', space=vmem, size = 0x1000, scoped, tag = 'output window, operand 0, single buffered']
    %6 = vsyncpa [#allocation3], 0
    %7 = vsyncpa [#allocation4], 0
    // Predicated region
    $region2: #{tpu_custom_call.1} parent=1 // pred_check
      _
    $region3: #{tpu_custom_call.1} parent=1 // pred_check_branch
      %9 = sbr.rel (0) target = $region5
    $region4: #{tpu_custom_call.1} parent=1 // pred_region
      %11 = vsyncadd [#allocation3], 0
      %s13 = sshll.u32 %s0, 4
      %s14 = int_to_ptr.hbm [resolvable:$true] %s13
      %s15 = sshll.u32 [#allocation2], 4
      %s16 = int_to_ptr.vmem [resolvable:$true] %s15
      %18 = dma.hbm_to_vmem [thread:$0]  %s14, 128, %s16, [#allocation3]
    $region5: #{tpu_custom_call.1} parent=1 // pred_fallthru
      _
    // Predicated region
    $region6: #{tpu_custom_call.1} parent=1 // pred_check
      _
    $region7: #{tpu_custom_call.1} parent=1 // pred_check_branch
      %20 = sbr.rel (0) target = $region9
    $region8: #{tpu_custom_call.1} parent=1 // pred_region
      %22 = dma.done [#allocation3], 128
    $region9: #{tpu_custom_call.1} parent=1 // pred_fallthru
      _
    %v23 = vld [vmem:[#allocation2] sm:$0xff]
    %vm24 = vcmask 105472
    %25 = vst.msk [vmem:[#allocation5] sm:$0xff] %vm24, %v23
    // Predicated region
    $region10: #{tpu_custom_call.1} parent=1 // pred_check
      _
    $region11: #{tpu_custom_call.1} parent=1 // pred_check_branch
      %27 = sbr.rel (0) target = $region13
    $region12: #{tpu_custom_call.1} parent=1 // pred_region
      %29 = vsyncadd [#allocation4], 0
      %s31 = sshll.u32 [#allocation5], 4
      %s32 = int_to_ptr.vmem [resolvable:$true] %s31
      %s33 = sshll.u32 %s1, 4
      %s34 = int_to_ptr.hbm [resolvable:$true] %s33
      %36 = dma.vmem_to_hbm [thread:$0]  %s32, 128, %s34, [#allocation4]
    $region13: #{tpu_custom_call.1} parent=1 // pred_fallthru
      _
    // Predicated region
    $region14: #{tpu_custom_call.1} parent=1 // pred_check
      _
    $region15: #{tpu_custom_call.1} parent=1 // pred_check_branch
      %38 = sbr.rel (0) target = $region17
    $region16: #{tpu_custom_call.1} parent=1 // pred_region
      %40 = dma.done [#allocation4], 128
    $region17: #{tpu_custom_call.1} parent=1 // pred_fallthru
      _
    %41 = vsyncpa [#allocation3], 1
    %42 = vsyncpa [#allocation4], 1

</llo_original>
